<compile_context>
chip_gen: v5e
topology: v5e:2x2
jax: 0.10.0
libtpu: 0.0.40
codegen_flags: <defaults>
</compile_context>

<pallas_src>
import functools

import jax
import jax.numpy as jnp
import numpy as np
from jax import lax
from jax.experimental import pallas as pl
from jax.experimental.pallas import tpu as pltpu


def _cross_attention_kernel(yq_ref, yk_ref, x_ref, wqk_ref, wv_ref, o_ref,
                            a_scr, m_scr, l_scr, acc_scr, *, compute_dtype):
    """One (batch, q-tile, kv-tile) grid step; everything channel-major.

    yq_ref : (C, TQ)  y, query-side tile (channels on sublanes, tokens on lanes)
    yk_ref : (C, TK)  y, key-side tile
    x_ref  : (C, TK)  x, value-side tile
    wqk_ref: (C, C)   fused Wk^T @ Wq   (so A = wqk @ y_q)
    wv_ref : (C, C)   value 1x1-conv weight, PyTorch (out, in) layout
    o_ref  : (C, TQ)  output tile, channel-major
    a_scr  : (C, TQ)  f32, query tile folded through the fused Q/K weight
    m_scr  : (1, TQ)  f32, running max   (online softmax)
    l_scr  : (1, TQ)  f32, running sum
    acc_scr: (C, TQ)  f32, running output accumulator
    """
    kv = pl.program_id(2)

    @pl.when(kv == 0)
    def _init():
        # A = (Wk^T Wq) @ y_q  : (C, TQ) -- computed once per q tile.
        a_scr[...] = jnp.dot(wqk_ref[...].astype(compute_dtype),
                             yq_ref[...].astype(compute_dtype),
                             preferred_element_type=jnp.float32)
        m_scr[...] = jnp.full_like(m_scr, -jnp.inf)
        l_scr[...] = jnp.zeros_like(l_scr)
        acc_scr[...] = jnp.zeros_like(acc_scr)

    # scores^T for this (q, kv) tile pair: s_t[j, i] = <y_k[:, j], A[:, i]>
    # Contract the channel (first) axes -- no materialized transpose.
    s_t = lax.dot_general(
        yk_ref[...].astype(compute_dtype), a_scr[...].astype(compute_dtype),
        dimension_numbers=(((0,), (0,)), ((), ())),
        preferred_element_type=jnp.float32)                       # (TK, TQ)

    # Value projection for this kv tile (1x1 conv == channel matmul): (C, TK).
    v = jnp.dot(wv_ref[...].astype(compute_dtype),
                x_ref[...].astype(compute_dtype),
                preferred_element_type=jnp.float32)

    # Online softmax over the kv axis (axis 0 of s_t); all stats kept in f32.
    m_prev = m_scr[...]                                           # (1, TQ)
    m_new = jnp.maximum(m_prev, jnp.max(s_t, axis=0, keepdims=True))
    alpha = jnp.exp(m_prev - m_new)                               # (1, TQ)
    p_t = jnp.exp(s_t - m_new)                                    # (TK, TQ)
    l_scr[...] = alpha * l_scr[...] + jnp.sum(p_t, axis=0, keepdims=True)
    acc_scr[...] = alpha * acc_scr[...] + jnp.dot(
        v.astype(compute_dtype), p_t.astype(compute_dtype),
        preferred_element_type=jnp.float32)                       # (C, TQ)
    m_scr[...] = m_new

    @pl.when(kv == pl.num_programs(2) - 1)
    def _finalize():
        l = l_scr[...]
        inv = pl.reciprocal(l, approx=True)       # EUP slot (otherwise idle)
        inv = inv * (2.0 - l * inv)               # one Newton step -> f32-accurate
        o_ref[...] = (acc_scr[...] * inv).astype(o_ref.dtype)


def _pick_tile(hw, preferred):
    """Largest tile <= preferred that divides hw and is lane-aligned (or hw)."""
    if hw <= preferred:
        return hw
    t = (preferred // 128) * 128
    while t >= 128:
        if hw % t == 0:
            return t
        t -= 128
    return hw  # full extent is always a legal block


def cross_attention_pallas(x, y, wq, wk, wv, *, tq=256, tk=512,
                           compute_dtype=jnp.float32):
    """CrossAttention forward.

    x, y : (B, C, H, W) float32
    wq, wk : (C//ratio, C)  1x1-conv weights in PyTorch (out, in) layout
    wv     : (C, C)
    compute_dtype: matmul input dtype (use jnp.bfloat16 on v6e/v7x for MXU
                   throughput; accumulation stays f32).
    """
    B, C, H, W = x.shape
    HW = H * W

    # Channel-major token layout (B, C, HW): pure reshape, no HBM transpose.
    x_cm = x.reshape(B, C, HW)
    y_cm = y.reshape(B, C, HW)

    # Fuse the two Cq-wide projections: scores = y^T (Wq^T Wk) y.
    # Pass M = Wk^T Wq so the kernel computes A = M @ y_q with a plain dot.
    w_qk = jnp.dot(wk.T, wq).astype(x.dtype)                      # (C, C)

    tq = _pick_tile(HW, tq)
    tk = _pick_tile(HW, tk)
    nq, nk = HW // tq, HW // tk
    grid = (B, nq, nk)

    yq_spec = pl.BlockSpec((pl.Squeezed(), C, tq), lambda b, qi, ki: (b, 0, qi))
    yk_spec = pl.BlockSpec((pl.Squeezed(), C, tk), lambda b, qi, ki: (b, 0, ki))
    xv_spec = pl.BlockSpec((pl.Squeezed(), C, tk), lambda b, qi, ki: (b, 0, ki))
    w_spec = pl.BlockSpec((C, C), lambda b, qi, ki: (0, 0))
    out_spec = pl.BlockSpec((pl.Squeezed(), C, tq), lambda b, qi, ki: (b, 0, qi))

    # Advisory cost estimate (scores + PV dominate; V-projection recomputed per
    # q tile; A-projection once per q tile).
    flops = B * (4 * C * HW * HW + 2 * C * C * HW * (nq + 1))
    cost = pl.CostEstimate(
        flops=int(flops),
        transcendentals=int(B * HW * HW),
        bytes_accessed=int(4 * (B * C * HW * (2 + 2 * nq) + 2 * C * C)),
    )

    # Rough per-step VMEM footprint (f32, double-buffered inputs/outputs +
    # persistent scratch + in-flight tiles); only raise the scoped limit when
    # the default 32 MiB would be tight.
    vmem_est = 4 * (
        2 * (C * tq + 2 * C * tk + 2 * C * C)   # double-buffered inputs
        + 2 * C * tq                            # double-buffered output
        + 2 * C * tq + 2 * tq                   # scratch (A, acc, m, l)
        + 2 * tk * tq + C * tk                  # score / value tiles in flight
    )
    vmem_limit = None
    if vmem_est > 24 * 1024 * 1024:
        vmem_limit = int(min(2 * vmem_est, 64 * 1024 * 1024))

    out_cm = pl.pallas_call(
        functools.partial(_cross_attention_kernel, compute_dtype=compute_dtype),
        out_shape=jax.ShapeDtypeStruct((B, C, HW), x.dtype),
        grid=grid,
        in_specs=[yq_spec, yk_spec, xv_spec, w_spec, w_spec],
        out_specs=out_spec,
        scratch_shapes=[
            pltpu.VMEM((C, tq), jnp.float32),   # A = (Wk^T Wq) y_q
            pltpu.VMEM((1, tq), jnp.float32),   # running max
            pltpu.VMEM((1, tq), jnp.float32),   # running sum
            pltpu.VMEM((C, tq), jnp.float32),   # output accumulator
        ],
        compiler_params=pltpu.CompilerParams(
            dimension_semantics=("parallel", "parallel", "arbitrary"),
            vmem_limit_bytes=vmem_limit),
        cost_estimate=cost,
    )(y_cm, y_cm, x_cm, w_qk, wv)

    return out_cm.reshape(B, C, H, W)


def cross_attention_ref(x, y, wq, wk, wv):
    """Pure-JAX reference mirroring the PyTorch forward exactly (unfused Q/K)."""
    B, C, H, W = x.shape
    HW = H * W
    y_cm = y.reshape(B, C, HW)
    x_cm = x.reshape(B, C, HW)
    y_q = jnp.einsum("qc,bci->bqi", wq, y_cm)                 # (B, Cq, HW)
    y_k = jnp.einsum("qc,bcj->bqj", wk, y_cm)                 # (B, Cq, HW)
    mask = jax.nn.softmax(jnp.einsum("bqi,bqj->bij", y_q, y_k), axis=-1)
    x_v = jnp.einsum("dc,bcj->bdj", wv, x_cm)                 # (B, C, HW)
    feat = jnp.einsum("bdj,bij->bdi", x_v, mask)              # (B, C, HW)
    return feat.reshape(B, C, H, W)


def init_weights(key, in_channel, ratio, scale=0.1):
    """kaiming_normal(fan_in)-style init * scale, PyTorch (out, in) layout."""
    cq = in_channel // ratio
    k1, k2, k3 = jax.random.split(key, 3)
    std = np.sqrt(2.0 / in_channel) * scale
    wq = jax.random.normal(k1, (cq, in_channel), jnp.float32) * std
    wk = jax.random.normal(k2, (cq, in_channel), jnp.float32) * std
    wv = jax.random.normal(k3, (in_channel, in_channel), jnp.float32) * std
    return wq, wk, wv


if __name__ == "__main__":
    in_channel, ratio = 32, 8
    B, H, W = 2, 8, 8

    key = jax.random.PRNGKey(0)
    kx, ky, kw = jax.random.split(key, 3)
    x = jax.random.normal(kx, (B, in_channel, H, W), jnp.float32)
    y = jax.random.normal(ky, (B, in_channel, H, W), jnp.float32)
    wq, wk, wv = init_weights(kw, in_channel, ratio)

    out = cross_attention_pallas(x, y, wq, wk, wv)
    out = jax.block_until_ready(out)

    ref = cross_attention_ref(x, y, wq, wk, wv)
    assert out.shape == (B, in_channel, H, W)
    np.testing.assert_allclose(np.asarray(out), np.asarray(ref),
                               rtol=1e-5, atol=1e-5)
    print("KERNEL_OK")
</pallas_src>

<mosaic_0001>
module attributes {stable_mosaic.version = 11 : i64} {
  func.func @_cross_attention_kernel(%arg0: i32, %arg1: i32, %arg2: i32, %arg3: memref<1x32x64xf32, #tpu.memory_space<vmem>>, %arg4: memref<1x32x64xf32, #tpu.memory_space<vmem>>, %arg5: memref<1x32x64xf32, #tpu.memory_space<vmem>>, %arg6: memref<32x32xf32, #tpu.memory_space<vmem>>, %arg7: memref<32x32xf32, #tpu.memory_space<vmem>>, %arg8: memref<1x32x64xf32, #tpu.memory_space<vmem>>, %arg9: memref<32x64xf32, #tpu.memory_space<vmem>>, %arg10: memref<1x64xf32, #tpu.memory_space<vmem>>, %arg11: memref<1x64xf32, #tpu.memory_space<vmem>>, %arg12: memref<32x64xf32, #tpu.memory_space<vmem>>) attributes {dimension_semantics = [#tpu.dimension_semantics<parallel>, #tpu.dimension_semantics<parallel>, #tpu.dimension_semantics<arbitrary>], iteration_bounds = array<i64: 2, 1, 1>, scalar_prefetch = 0 : i64, scratch_operands = 4 : i64, tpu.core_type = #tpu.core_type<tc>, window_params = [{transform_indices = @transform_0, window_bounds = array<i64: 1, 32, 64>}, {transform_indices = @transform_1, window_bounds = array<i64: 1, 32, 64>}, {transform_indices = @transform_2, window_bounds = array<i64: 1, 32, 64>}, {pipeline_mode = #tpu.pipeline_mode<synchronous>, transform_indices = @transform_3, window_bounds = array<i64: 32, 32>}, {pipeline_mode = #tpu.pipeline_mode<synchronous>, transform_indices = @transform_4, window_bounds = array<i64: 32, 32>}, {transform_indices = @transform_5, window_bounds = array<i64: 1, 32, 64>}]} {
    %c0_i32 = arith.constant 0 : i32
    %0 = arith.cmpi eq, %arg2, %c0_i32 : i32
    %1 = arith.extui %0 : i1 to i32
    %c0_i32_0 = arith.constant 0 : i32
    %2 = arith.cmpi ne, %1, %c0_i32_0 : i32
    scf.if %2 {
      %c0_28 = arith.constant 0 : index
      %c0_29 = arith.constant 0 : index
      %36 = vector.load %arg6[%c0_28, %c0_29] : memref<32x32xf32, #tpu.memory_space<vmem>>, vector<32x32xf32>
      %c0_30 = arith.constant 0 : index
      %c0_31 = arith.constant 0 : index
      %c0_32 = arith.constant 0 : index
      %37 = vector.load %arg3[%c0_30, %c0_31, %c0_32] : memref<1x32x64xf32, #tpu.memory_space<vmem>>, vector<1x32x64xf32>
      %38 = vector.shape_cast %37 : vector<1x32x64xf32> to vector<32x64xf32>
      %cst_33 = arith.constant dense<0.000000e+00> : vector<32x64xf32>
      %39 = tpu.matmul %36, %38, %cst_33 {dimension_numbers = #tpu.dot_dimension_numbers<[1], [0], [0], [1], [0, 0, 1, 1], [], []>} : vector<32x32xf32>, vector<32x64xf32>, vector<32x64xf32> -> vector<32x64xf32>
      %c0_34 = arith.constant 0 : index
      %c0_35 = arith.constant 0 : index
      %40 = vector.load %arg9[%c0_34, %c0_35] : memref<32x64xf32, #tpu.memory_space<vmem>>, vector<32x64xf32>
      tpu.vector_store %arg9[%c0_34, %c0_35], %39 {strides = array<i32>} : memref<32x64xf32, #tpu.memory_space<vmem>>, vector<32x64xf32>,
      %cst_36 = arith.constant 0xFF800000 : f32
      %41 = vector.broadcast %cst_36 : f32 to vector<1x64xf32>
      %c0_37 = arith.constant 0 : index
      %c0_38 = arith.constant 0 : index
      %42 = vector.load %arg10[%c0_37, %c0_38] : memref<1x64xf32, #tpu.memory_space<vmem>>, vector<1x64xf32>
      tpu.vector_store %arg10[%c0_37, %c0_38], %41 {strides = array<i32>} : memref<1x64xf32, #tpu.memory_space<vmem>>, vector<1x64xf32>,
      %cst_39 = arith.constant 0.000000e+00 : f32
      %43 = vector.broadcast %cst_39 : f32 to vector<1x64xf32>
      %c0_40 = arith.constant 0 : index
      %c0_41 = arith.constant 0 : index
      %44 = vector.load %arg11[%c0_40, %c0_41] : memref<1x64xf32, #tpu.memory_space<vmem>>, vector<1x64xf32>
      tpu.vector_store %arg11[%c0_40, %c0_41], %43 {strides = array<i32>} : memref<1x64xf32, #tpu.memory_space<vmem>>, vector<1x64xf32>,
      %cst_42 = arith.constant 0.000000e+00 : f32
      %45 = vector.broadcast %cst_42 : f32 to vector<32x64xf32>
      %c0_43 = arith.constant 0 : index
      %c0_44 = arith.constant 0 : index
      %46 = vector.load %arg12[%c0_43, %c0_44] : memref<32x64xf32, #tpu.memory_space<vmem>>, vector<32x64xf32>
      tpu.vector_store %arg12[%c0_43, %c0_44], %45 {strides = array<i32>} : memref<32x64xf32, #tpu.memory_space<vmem>>, vector<32x64xf32>,
    } else {
    }
    %c0 = arith.constant 0 : index
    %c0_1 = arith.constant 0 : index
    %c0_2 = arith.constant 0 : index
    %3 = vector.load %arg4[%c0, %c0_1, %c0_2] : memref<1x32x64xf32, #tpu.memory_space<vmem>>, vector<1x32x64xf32>
    %4 = vector.shape_cast %3 : vector<1x32x64xf32> to vector<32x64xf32>
    %c0_3 = arith.constant 0 : index
    %c0_4 = arith.constant 0 : index
    %5 = vector.load %arg9[%c0_3, %c0_4] : memref<32x64xf32, #tpu.memory_space<vmem>>, vector<32x64xf32>
    %cst = arith.constant dense<0.000000e+00> : vector<64x64xf32>
    %6 = tpu.matmul %4, %5, %cst {dimension_numbers = #tpu.dot_dimension_numbers<[0], [0], [1], [1], [0, 1, 1, 1], [], []>} : vector<32x64xf32>, vector<32x64xf32>, vector<64x64xf32> -> vector<64x64xf32>
    %c0_5 = arith.constant 0 : index
    %c0_6 = arith.constant 0 : index
    %7 = vector.load %arg7[%c0_5, %c0_6] : memref<32x32xf32, #tpu.memory_space<vmem>>, vector<32x32xf32>
    %c0_7 = arith.constant 0 : index
    %c0_8 = arith.constant 0 : index
    %c0_9 = arith.constant 0 : index
    %8 = vector.load %arg5[%c0_7, %c0_8, %c0_9] : memref<1x32x64xf32, #tpu.memory_space<vmem>>, vector<1x32x64xf32>
    %9 = vector.shape_cast %8 : vector<1x32x64xf32> to vector<32x64xf32>
    %cst_10 = arith.constant dense<0.000000e+00> : vector<32x64xf32>
    %10 = tpu.matmul %7, %9, %cst_10 {dimension_numbers = #tpu.dot_dimension_numbers<[1], [0], [0], [1], [0, 0, 1, 1], [], []>} : vector<32x32xf32>, vector<32x64xf32>, vector<32x64xf32> -> vector<32x64xf32>
    %c0_11 = arith.constant 0 : index
    %c0_12 = arith.constant 0 : index
    %11 = vector.load %arg10[%c0_11, %c0_12] : memref<1x64xf32, #tpu.memory_space<vmem>>, vector<1x64xf32>
    %cst_13 = arith.constant dense<0xFF800000> : vector<64xf32>
    %12 = vector.multi_reduction <maximumf>, %6, %cst_13 [0] : vector<64x64xf32> to vector<64xf32>
    %13 = vector.shape_cast %12 : vector<64xf32> to vector<1x64xf32>
    %14 = arith.maximumf %11, %13 : vector<1x64xf32>
    %15 = arith.subf %11, %14 : vector<1x64xf32>
    %16 = math.exp %15 : vector<1x64xf32>
    %17 = vector.broadcast %14 : vector<1x64xf32> to vector<64x64xf32>
    %18 = arith.subf %6, %17 : vector<64x64xf32>
    %19 = math.exp %18 : vector<64x64xf32>
    %c0_14 = arith.constant 0 : index
    %c0_15 = arith.constant 0 : index
    %20 = vector.load %arg11[%c0_14, %c0_15] : memref<1x64xf32, #tpu.memory_space<vmem>>, vector<1x64xf32>
    %21 = arith.mulf %16, %20 : vector<1x64xf32>
    %cst_16 = arith.constant dense<0.000000e+00> : vector<64xf32>
    %22 = vector.multi_reduction <add>, %19, %cst_16 [0] : vector<64x64xf32> to vector<64xf32>
    %23 = vector.shape_cast %22 : vector<64xf32> to vector<1x64xf32>
    %24 = arith.addf %21, %23 : vector<1x64xf32>
    %c0_17 = arith.constant 0 : index
    %c0_18 = arith.constant 0 : index
    %25 = vector.load %arg11[%c0_17, %c0_18] : memref<1x64xf32, #tpu.memory_space<vmem>>, vector<1x64xf32>
    tpu.vector_store %arg11[%c0_17, %c0_18], %24 {strides = array<i32>} : memref<1x64xf32, #tpu.memory_space<vmem>>, vector<1x64xf32>,
    %c0_19 = arith.constant 0 : index
    %c0_20 = arith.constant 0 : index
    %26 = vector.load %arg12[%c0_19, %c0_20] : memref<32x64xf32, #tpu.memory_space<vmem>>, vector<32x64xf32>
    %27 = vector.broadcast %16 : vector<1x64xf32> to vector<32x64xf32>
    %28 = arith.mulf %27, %26 : vector<32x64xf32>
    %cst_21 = arith.constant dense<0.000000e+00> : vector<32x64xf32>
    %29 = tpu.matmul %10, %19, %cst_21 {dimension_numbers = #tpu.dot_dimension_numbers<[1], [0], [0], [1], [0, 0, 1, 1], [], []>} : vector<32x64xf32>, vector<64x64xf32>, vector<32x64xf32> -> vector<32x64xf32>
    %30 = arith.addf %28, %29 : vector<32x64xf32>
    %c0_22 = arith.constant 0 : index
    %c0_23 = arith.constant 0 : index
    %31 = vector.load %arg12[%c0_22, %c0_23] : memref<32x64xf32, #tpu.memory_space<vmem>>, vector<32x64xf32>
    tpu.vector_store %arg12[%c0_22, %c0_23], %30 {strides = array<i32>} : memref<32x64xf32, #tpu.memory_space<vmem>>, vector<32x64xf32>,
    %c0_24 = arith.constant 0 : index
    %c0_25 = arith.constant 0 : index
    %32 = vector.load %arg10[%c0_24, %c0_25] : memref<1x64xf32, #tpu.memory_space<vmem>>, vector<1x64xf32>
    tpu.vector_store %arg10[%c0_24, %c0_25], %14 {strides = array<i32>} : memref<1x64xf32, #tpu.memory_space<vmem>>, vector<1x64xf32>,
    %c0_i32_26 = arith.constant 0 : i32
    %33 = arith.cmpi eq, %arg2, %c0_i32_26 : i32
    %34 = arith.extui %33 : i1 to i32
    %c0_i32_27 = arith.constant 0 : i32
    %35 = arith.cmpi ne, %34, %c0_i32_27 : i32
    scf.if %35 {
      %c0_28 = arith.constant 0 : index
      %c0_29 = arith.constant 0 : index
      %36 = vector.load %arg11[%c0_28, %c0_29] : memref<1x64xf32, #tpu.memory_space<vmem>>, vector<1x64xf32>
      %37 = tpu.reciprocal %36 {approx = true} : vector<1x64xf32> -> vector<1x64xf32>
      %38 = arith.mulf %36, %37 : vector<1x64xf32>
      %cst_30 = arith.constant 2.000000e+00 : f32
      %39 = vector.broadcast %cst_30 : f32 to vector<1x64xf32>
      %40 = arith.subf %39, %38 : vector<1x64xf32>
      %41 = arith.mulf %37, %40 : vector<1x64xf32>
      %c0_31 = arith.constant 0 : index
      %c0_32 = arith.constant 0 : index
      %42 = vector.load %arg12[%c0_31, %c0_32] : memref<32x64xf32, #tpu.memory_space<vmem>>, vector<32x64xf32>
      %43 = vector.broadcast %41 : vector<1x64xf32> to vector<32x64xf32>
      %44 = arith.mulf %42, %43 : vector<32x64xf32>
      %c0_33 = arith.constant 0 : index
      %c0_34 = arith.constant 0 : index
      %c0_35 = arith.constant 0 : index
      %45 = vector.load %arg8[%c0_33, %c0_34, %c0_35] : memref<1x32x64xf32, #tpu.memory_space<vmem>>, vector<1x32x64xf32>
      %46 = vector.shape_cast %45 : vector<1x32x64xf32> to vector<32x64xf32>
      %47 = vector.shape_cast %44 : vector<32x64xf32> to vector<1x32x64xf32>
      tpu.vector_store %arg8[%c0_33, %c0_34, %c0_35], %47 {strides = array<i32>} : memref<1x32x64xf32, #tpu.memory_space<vmem>>, vector<1x32x64xf32>,
    } else {
    }
    return
  }
  func.func @transform_0(%arg0: i32, %arg1: i32, %arg2: i32) -> (i32, i32, i32) {
    %c0_i32 = arith.constant 0 : i32
    %c0_i32_0 = arith.constant 0 : i32
    return %arg0, %c0_i32, %arg1 : i32, i32, i32
  }
  func.func @transform_1(%arg0: i32, %arg1: i32, %arg2: i32) -> (i32, i32, i32) {
    %c0_i32 = arith.constant 0 : i32
    %c0_i32_0 = arith.constant 0 : i32
    return %arg0, %c0_i32, %arg2 : i32, i32, i32
  }
  func.func @transform_2(%arg0: i32, %arg1: i32, %arg2: i32) -> (i32, i32, i32) {
    %c0_i32 = arith.constant 0 : i32
    %c0_i32_0 = arith.constant 0 : i32
    return %arg0, %c0_i32, %arg2 : i32, i32, i32
  }
  func.func @transform_3(%arg0: i32, %arg1: i32, %arg2: i32) -> (i32, i32) {
    %c0_i32 = arith.constant 0 : i32
    %c0_i32_0 = arith.constant 0 : i32
    %c0_i32_1 = arith.constant 0 : i32
    return %c0_i32, %c0_i32_0 : i32, i32
  }
  func.func @transform_4(%arg0: i32, %arg1: i32, %arg2: i32) -> (i32, i32) {
    %c0_i32 = arith.constant 0 : i32
    %c0_i32_0 = arith.constant 0 : i32
    %c0_i32_1 = arith.constant 0 : i32
    return %c0_i32, %c0_i32_0 : i32, i32
  }
  func.func @transform_5(%arg0: i32, %arg1: i32, %arg2: i32) -> (i32, i32, i32) {
    %c0_i32 = arith.constant 0 : i32
    %c0_i32_0 = arith.constant 0 : i32
    return %arg0, %c0_i32, %arg1 : i32, i32, i32
  }
}

</mosaic_0001>

<llo_original>
// kernel: tpu_custom_call.1
$region0: #{tpu_custom_call.1}
  #allocation0 [shape = 'u32[]', space=smem, size = 0x4, offset = 0x4, fixed_abs, tag = 'smem constant byte address 0x4 - core index']
  #allocation1 [shape = 'u32[72,128]{1,0:T(1,128)}', space=vmem, size = 0x9000, scoped, tag = 'internal scratch']
  #allocation2 [shape = 'f32[32,64]{1,0:T(8,128)}', space=vmem, size = 0x4000, scoped, tag = 'scratch operand']
  #allocation3 [shape = 'f32[1,64]{1,0:T(1,128)}', space=vmem, size = 0x200, scoped, tag = 'scratch operand']
  #allocation4 [shape = 'f32[1,64]{1,0:T(1,128)}', space=vmem, size = 0x200, scoped, tag = 'scratch operand']
  #allocation5 [shape = 'f32[32,64]{1,0:T(8,128)}', space=vmem, size = 0x4000, scoped, tag = 'scratch operand']
  %s0 = inlined_call_operand.hbm [shape: f32[2,32,64], index: 0, kind: input, shape index: {}]
  %s1 = inlined_call_operand.hbm [shape: f32[2,32,64], index: 1, kind: input, shape index: {}]
  %s2 = inlined_call_operand.hbm [shape: f32[2,32,64], index: 2, kind: input, shape index: {}]
  %s3 = inlined_call_operand.hbm [shape: f32[32,32], index: 3, kind: input, shape index: {}]
  %s4 = inlined_call_operand.hbm [shape: f32[32,32], index: 4, kind: input, shape index: {}]
  %s5 = inlined_call_operand.hbm [shape: f32[2,32,64], index: 5, kind: output, shape index: {}]
  %s6 = sld [smem:[#allocation0]]
  $region81: #{tpu_custom_call.1} parent=0
    _
  %s8 = ssub.s32 1, %s6
  %s9 = scalar_select 0, %s8, %s6
  $region1: #{tpu_custom_call.1} parent=0
    #allocation6 [shape = 'u8[32768]{0}', space=vmem, size = 0x8000, scoped, tag = 'input window, operand 0']
    #allocation7 [shape = 's32[2]{0}', space=sflag, size = 0x8, scoped, tag = 'scoped memory for tpu_custom_call.1']
    #allocation8 [shape = 's32[2]{0}', space=sflag, size = 0x8, scoped, tag = 'scoped memory for tpu_custom_call.1']
    #allocation9 [shape = 'u8[32768]{0}', space=vmem, size = 0x8000, scoped, tag = 'input window, operand 1']
    #allocation10 [shape = 's32[2]{0}', space=sflag, size = 0x8, scoped, tag = 'scoped memory for tpu_custom_call.1']
    #allocation11 [shape = 'u8[32768]{0}', space=vmem, size = 0x8000, scoped, tag = 'input window, operand 2']
    #allocation12 [shape = 'u8[16384]{0}', space=vmem, size = 0x4000, scoped, tag = 'input window, operand 3, single buffered']
    #allocation13 [shape = 's32[1]{0}', space=sflag, size = 0x4, scoped, tag = 'scoped memory for tpu_custom_call.1']
    #allocation14 [shape = 'u8[16384]{0}', space=vmem, size = 0x4000, scoped, tag = 'input window, operand 4, single buffered']
    #allocation15 [shape = 'u8[32768]{0}', space=vmem, size = 0x8000, scoped, tag = 'output window, operand 0']
    %10 = vsyncpa [#allocation7], 0
    %s11 = scalar_lea.sflag [#allocation7], 1
    %12 = vsyncpa %s11, 0
    %13 = vsyncpa [#allocation10], 0
    %s14 = scalar_lea.sflag [#allocation10], 1
    %15 = vsyncpa %s14, 0
    %16 = vsyncpa [#allocation13], 0
    %17 = vsyncpa [#allocation8], 0
    %s18 = scalar_lea.sflag [#allocation8], 1
    %19 = vsyncpa %s18, 0
    loop: start=0, step=1, limit=4
    $region2: #{tpu_custom_call.1} parent=1 // loop_pre_header
      _
    $region3: #{tpu_custom_call.1} parent=1 // loop_header
      %s21 = sphi 0, %s25
      %p22 = scmp.ge.s32.totalorder %s21, 4
      %s28 = sphi 0, %s47
      %s29 = sphi 0, %s43
      %s30 = sphi 0, %s39
      %s31 = sphi 0, %s28
      %s32 = sphi 0, %s29
      %s33 = sphi 0, %s30
      %s34 = sphi 0, %s31
      %s35 = sphi 0, %s32
      %s36 = sphi 0, %s33
      %s52 = sphi 0, %s54
      %s55 = sphi 0, %s52
      %s56 = sphi 0, %s55
      %s72 = sphi 0, %s56
      %s80 = sphi 0, %s82
      %s83 = sphi 0, %s80
      %s84 = sphi 0, %s83
      %s100 = sphi 0, %s84
      %s108 = sphi 0, %s110
      %s111 = sphi 0, %s108
      %s112 = sphi 0, %s111
      %s128 = sphi 0, %s112
      %s132 = sphi 0, %s132
      %s134 = sphi 0, %s132
      %s135 = sphi 0, %s134
      %s149 = sphi 0, %s135
      %s153 = sphi 0, %s153
      %s155 = sphi 0, %s153
      %s156 = sphi 0, %s155
      %s170 = sphi 0, %s156
      %s178 = sphi 0, %s180
      %s181 = sphi 0, %s178
      %s182 = sphi 0, %s181
      %s198 = sphi 0, %s182
    $region4: #{tpu_custom_call.1} parent=1 // loop_header_branch
      %24 = sbr.rel (%p22) target = $region8
    $region5: #{tpu_custom_call.1} parent=1 // loop_body
      %s26 = ssub.s32 %s21, 1
      %s27 = ssub.s32 %s21, 2
      %s37 = sadd.s32 1, %s30
      %p38 = scmp.ge.s32.totalorder %s37, 1
      %s39 = scalar_select %p38, 0, %s37
      %s40 = sadd.s32 1, %s29
      %s41 = scalar_select %p38, %s40, %s29
      %p42 = scmp.ge.s32.totalorder %s41, 1
      %s43 = scalar_select %p42, 0, %s41
      %s44 = sadd.s32 1, %s28
      %s45 = scalar_select %p42, %s44, %s28
      %p46 = scmp.ge.s32.totalorder %s45, 2
      %s47 = scalar_select %p46, 0, %s45
      %s48 = ssub.s32 %s28, %s47
      %s49 = ssub.s32 %s29, %s43
      %s50 = sor.u32 %s48, %s49
      %p51 = scmp.eq.s32.totalorder %s50, 0
      %s53 = sadd.s32 %s52, 1
      %s54 = scalar_select %p51, %s52, %s53
      %p57 = pneg %p51
      %p58 = scmp.eq.s32.totalorder %s21, 1
      %p59 = por %p57, %p58
      %p60 = scmp.ne.s32.totalorder %s52, %s55
      %p61 = scmp.eq.s32.totalorder %s21, 0
      %p62 = por %p60, %p61
      %p63 = scmp.ne.s32.totalorder %s52, %s55
      %p64 = scmp.eq.s32.totalorder %s26, 1
      %p65 = por %p63, %p64
      %p66 = scmp.ne.s32.totalorder %s55, %s56
      %p67 = scmp.eq.s32.totalorder %s26, 0
      %p68 = por %p66, %p67
      %p69 = scmp.ne.s32.totalorder %s55, %s56
      %p70 = scmp.eq.s32.totalorder %s27, 1
      %p71 = por %p69, %p70
      %p73 = scmp.ne.s32.totalorder %s56, %s72
      %p74 = scmp.eq.s32.totalorder %s27, 0
      %p75 = por %p73, %p74
      %s76 = ssub.s32 %s28, %s47
      %s77 = ssub.s32 %s30, %s39
      %s78 = sor.u32 %s76, %s77
      %p79 = scmp.eq.s32.totalorder %s78, 0
      %s81 = sadd.s32 %s80, 1
      %s82 = scalar_select %p79, %s80, %s81
      %p85 = pneg %p79
      %p86 = scmp.eq.s32.totalorder %s21, 1
      %p87 = por %p85, %p86
      %p88 = scmp.ne.s32.totalorder %s80, %s83
      %p89 = scmp.eq.s32.totalorder %s21, 0
      %p90 = por %p88, %p89
      %p91 = scmp.ne.s32.totalorder %s80, %s83
      %p92 = scmp.eq.s32.totalorder %s26, 1
      %p93 = por %p91, %p92
      %p94 = scmp.ne.s32.totalorder %s83, %s84
      %p95 = scmp.eq.s32.totalorder %s26, 0
      %p96 = por %p94, %p95
      %p97 = scmp.ne.s32.totalorder %s83, %s84
      %p98 = scmp.eq.s32.totalorder %s27, 1
      %p99 = por %p97, %p98
      %p101 = scmp.ne.s32.totalorder %s84, %s100
      %p102 = scmp.eq.s32.totalorder %s27, 0
      %p103 = por %p101, %p102
      %s104 = ssub.s32 %s28, %s47
      %s105 = ssub.s32 %s30, %s39
      %s106 = sor.u32 %s104, %s105
      %p107 = scmp.eq.s32.totalorder %s106, 0
      %s109 = sadd.s32 %s108, 1
      %s110 = scalar_select %p107, %s108, %s109
      %p113 = pneg %p107
      %p114 = scmp.eq.s32.totalorder %s21, 1
      %p115 = por %p113, %p114
      %p116 = scmp.ne.s32.totalorder %s108, %s111
      %p117 = scmp.eq.s32.totalorder %s21, 0
      %p118 = por %p116, %p117
      %p119 = scmp.ne.s32.totalorder %s108, %s111
      %p120 = scmp.eq.s32.totalorder %s26, 1
      %p121 = por %p119, %p120
      %p122 = scmp.ne.s32.totalorder %s111, %s112
      %p123 = scmp.eq.s32.totalorder %s26, 0
      %p124 = por %p122, %p123
      %p125 = scmp.ne.s32.totalorder %s111, %s112
      %p126 = scmp.eq.s32.totalorder %s27, 1
      %p127 = por %p125, %p126
      %p129 = scmp.ne.s32.totalorder %s112, %s128
      %p130 = scmp.eq.s32.totalorder %s27, 0
      %p131 = por %p129, %p130
      %s133 = sadd.s32 %s132, 1
      %p136 = scmp.eq.s32.totalorder %s21, 1
      %p137 = scmp.ne.s32.totalorder %s132, %s134
      %p138 = scmp.eq.s32.totalorder %s21, 0
      %p139 = por %p137, %p138
      %p140 = scmp.ne.s32.totalorder %s132, %s134
      %p141 = scmp.eq.s32.totalorder %s26, 1
      %p142 = por %p140, %p141
      %p143 = scmp.ne.s32.totalorder %s134, %s135
      %p144 = scmp.eq.s32.totalorder %s26, 0
      %p145 = por %p143, %p144
      %p146 = scmp.ne.s32.totalorder %s134, %s135
      %p147 = scmp.eq.s32.totalorder %s27, 1
      %p148 = por %p146, %p147
      %p150 = scmp.ne.s32.totalorder %s135, %s149
      %p151 = scmp.eq.s32.totalorder %s27, 0
      %p152 = por %p150, %p151
      %s154 = sadd.s32 %s153, 1
      %p157 = scmp.eq.s32.totalorder %s21, 1
      %p158 = scmp.ne.s32.totalorder %s153, %s155
      %p159 = scmp.eq.s32.totalorder %s21, 0
      %p160 = por %p158, %p159
      %p161 = scmp.ne.s32.totalorder %s153, %s155
      %p162 = scmp.eq.s32.totalorder %s26, 1
      %p163 = por %p161, %p162
      %p164 = scmp.ne.s32.totalorder %s155, %s156
      %p165 = scmp.eq.s32.totalorder %s26, 0
      %p166 = por %p164, %p165
      %p167 = scmp.ne.s32.totalorder %s155, %s156
      %p168 = scmp.eq.s32.totalorder %s27, 1
      %p169 = por %p167, %p168
      %p171 = scmp.ne.s32.totalorder %s156, %s170
      %p172 = scmp.eq.s32.totalorder %s27, 0
      %p173 = por %p171, %p172
      %s174 = ssub.s32 %s28, %s47
      %s175 = ssub.s32 %s29, %s43
      %s176 = sor.u32 %s174, %s175
      %p177 = scmp.eq.s32.totalorder %s176, 0
      %s179 = sadd.s32 %s178, 1
      %s180 = scalar_select %p177, %s178, %s179
      %p183 = pneg %p177
      %p184 = scmp.eq.s32.totalorder %s21, 1
      %p185 = por %p183, %p184
      %p186 = scmp.ne.s32.totalorder %s178, %s181
      %p187 = scmp.eq.s32.totalorder %s21, 0
      %p188 = por %p186, %p187
      %p189 = scmp.ne.s32.totalorder %s178, %s181
      %p190 = scmp.eq.s32.totalorder %s26, 1
      %p191 = por %p189, %p190
      %p192 = scmp.ne.s32.totalorder %s181, %s182
      %p193 = scmp.eq.s32.totalorder %s26, 0
      %p194 = por %p192, %p193
      %p195 = scmp.ne.s32.totalorder %s181, %s182
      %p196 = scmp.eq.s32.totalorder %s27, 1
      %p197 = por %p195, %p196
      %p199 = scmp.ne.s32.totalorder %s182, %s198
      %p200 = scmp.eq.s32.totalorder %s27, 0
      %p201 = por %p199, %p200
      %p202 = scmp.le.s32.totalorder 1, %s21
      %p203 = scmp.lt.s32.totalorder %s21, 3
      %p204 = pnand %p202, %p203
      %p205 = pneg %p204
      // Predicated region
      $region9: #{tpu_custom_call.1} parent=5 // pred_check
        _
      $region10: #{tpu_custom_call.1} parent=5 // pred_check_branch
        %207 = sbr.rel (%p204) target = $region12
      $region11: #{tpu_custom_call.1} parent=5 // pred_region
        %s208 = ssub.s32 %s21, 1
        // Predicated region
        $region13: #{tpu_custom_call.1} parent=11 // pred_check
          %p209 = pneg %p145
        $region14: #{tpu_custom_call.1} parent=11 // pred_check_branch
          %211 = sbr.rel (%p209) target = $region16
        $region15: #{tpu_custom_call.1} parent=11 // pred_region
          %213 = vsyncadd [#allocation13], 0
          %s214 = sshll.u32 %s3, 4
          %s215 = int_to_ptr.hbm [resolvable:$true] %s214
          %s216 = sshll.u32 [#allocation12], 4
          %s217 = int_to_ptr.vmem [resolvable:$true] %s216
          %222 = dma.hbm_to_vmem [thread:$0]  %s215, 512, %s217, [#allocation13], 128, 128, 8
        $region16: #{tpu_custom_call.1} parent=11 // pred_fallthru
          _
        // Predicated region
        $region17: #{tpu_custom_call.1} parent=11 // pred_check
          %p223 = pneg %p166
        $region18: #{tpu_custom_call.1} parent=11 // pred_check_branch
          %225 = sbr.rel (%p223) target = $region20
        $region19: #{tpu_custom_call.1} parent=11 // pred_region
          %227 = vsyncadd [#allocation13], 0
          %s228 = sshll.u32 %s4, 4
          %s229 = int_to_ptr.hbm [resolvable:$true] %s228
          %s230 = sshll.u32 [#allocation14], 4
          %s231 = int_to_ptr.vmem [resolvable:$true] %s230
          %236 = dma.hbm_to_vmem [thread:$0]  %s229, 512, %s231, [#allocation13], 128, 128, 8
        $region20: #{tpu_custom_call.1} parent=11 // pred_fallthru
          _
      $region12: #{tpu_custom_call.1} parent=5 // pred_fallthru
        _
      %p237 = scmp.lt.s32.totalorder %s21, 2
      // Predicated region
      $region21: #{tpu_custom_call.1} parent=5 // pred_check
        %p238 = pneg %p237
      $region22: #{tpu_custom_call.1} parent=5 // pred_check_branch
        %240 = sbr.rel (%p238) target = $region24
      $region23: #{tpu_custom_call.1} parent=5 // pred_region
        // Predicated region
        $region25: #{tpu_custom_call.1} parent=23 // pred_check
          %p241 = pneg %p62
        $region26: #{tpu_custom_call.1} parent=23 // pred_check_branch
          %243 = sbr.rel (%p241) target = $region28
        $region27: #{tpu_custom_call.1} parent=23 // pred_region
          %s244 = sand.u32 %s52, 1
          %s245 = scalar_lea.sflag [#allocation7], %s244
          %s246 = sand.u32 %s52, 1
          %s247 = smul.addr %s246, 32
          %s248 = scalar_lea.vmem [#allocation6], %s247
          %250 = vsyncadd %s245, 0
          %s251 = smul.addr %s28, 4
          %s252 = sadd.s32 %s29, %s251
          %s253 = smul.addr %s252, 8
          %s254 = scalar_lea.hbm %s0, %s253
          %s255 = sshll.u32 %s254, 4
          %s256 = int_to_ptr.hbm [resolvable:$true] %s255
          %s257 = sshll.u32 %s248, 4
          %s258 = int_to_ptr.vmem [resolvable:$true] %s257
          %263 = dma.hbm_to_vmem [thread:$0]  %s256, 512, %s258, %s245, 128, 128, 8
        $region28: #{tpu_custom_call.1} parent=23 // pred_fallthru
          _
        // Predicated region
        $region29: #{tpu_custom_call.1} parent=23 // pred_check
          %p264 = pneg %p90
        $region30: #{tpu_custom_call.1} parent=23 // pred_check_branch
          %266 = sbr.rel (%p264) target = $region32
        $region31: #{tpu_custom_call.1} parent=23 // pred_region
          %s267 = sand.u32 %s21, 1
          %s268 = scalar_lea.sflag [#allocation10], %s267
          %s269 = sand.u32 %s80, 1
          %s270 = smul.addr %s269, 32
          %s271 = scalar_lea.vmem [#allocation9], %s270
          %273 = vsyncadd %s268, 0
          %s274 = smul.addr %s28, 4
          %s275 = sadd.s32 %s30, %s274
          %s276 = smul.addr %s275, 8
          %s277 = scalar_lea.hbm %s1, %s276
          %s278 = sshll.u32 %s277, 4
          %s279 = int_to_ptr.hbm [resolvable:$true] %s278
          %s280 = sshll.u32 %s271, 4
          %s281 = int_to_ptr.vmem [resolvable:$true] %s280
          %286 = dma.hbm_to_vmem [thread:$0]  %s279, 512, %s281, %s268, 128, 128, 8
        $region32: #{tpu_custom_call.1} parent=23 // pred_fallthru
          _
        // Predicated region
        $region33: #{tpu_custom_call.1} parent=23 // pred_check
          %p287 = pneg %p118
        $region34: #{tpu_custom_call.1} parent=23 // pred_check_branch
          %289 = sbr.rel (%p287) target = $region36
        $region35: #{tpu_custom_call.1} parent=23 // pred_region
          %s290 = sand.u32 %s21, 1
          %s291 = scalar_lea.sflag [#allocation10], %s290
          %s292 = sand.u32 %s108, 1
          %s293 = smul.addr %s292, 32
          %s294 = scalar_lea.vmem [#allocation11], %s293
          %296 = vsyncadd %s291, 0
          %s297 = smul.addr %s28, 4
          %s298 = sadd.s32 %s30, %s297
          %s299 = smul.addr %s298, 8
          %s300 = scalar_lea.hbm %s2, %s299
          %s301 = sshll.u32 %s300, 4
          %s302 = int_to_ptr.hbm [resolvable:$true] %s301
          %s303 = sshll.u32 %s294, 4
          %s304 = int_to_ptr.vmem [resolvable:$true] %s303
          %309 = dma.hbm_to_vmem [thread:$0]  %s302, 512, %s304, %s291, 128, 128, 8
        $region36: #{tpu_custom_call.1} parent=23 // pred_fallthru
          _
      $region24: #{tpu_custom_call.1} parent=5 // pred_fallthru
        _
      %p310 = scmp.le.s32.totalorder 1, %s21
      %p311 = scmp.lt.s32.totalorder %s21, 3
      %p312 = pnand %p310, %p311
      %p313 = pneg %p312
      // Predicated region
      $region37: #{tpu_custom_call.1} parent=5 // pred_check
        _
      $region38: #{tpu_custom_call.1} parent=5 // pred_check_branch
        %315 = sbr.rel (%p312) target = $region40
      $region39: #{tpu_custom_call.1} parent=5 // pred_region
        %s316 = ssub.s32 %s21, 1
        %s317 = sand.u32 %s55, 1
        %s318 = scalar_lea.sflag [#allocation7], %s317
        %s319 = sand.u32 %s55, 1
        %s320 = smul.addr %s319, 32
        %s321 = scalar_lea.vmem [#allocation6], %s320
        // Predicated region
        $region41: #{tpu_custom_call.1} parent=39 // pred_check
          %p322 = pneg %p68
        $region42: #{tpu_custom_call.1} parent=39 // pred_check_branch
          %324 = sbr.rel (%p322) target = $region44
        $region43: #{tpu_custom_call.1} parent=39 // pred_region
          %326 = dma.done %s318, 512
        $region44: #{tpu_custom_call.1} parent=39 // pred_fallthru
          _
        %s327 = sand.u32 %s26, 1
        %s328 = scalar_lea.sflag [#allocation10], %s327
        %s329 = sand.u32 %s83, 1
        %s330 = smul.addr %s329, 32
        %s331 = scalar_lea.vmem [#allocation9], %s330
        // Predicated region
        $region45: #{tpu_custom_call.1} parent=39 // pred_check
          %p332 = pneg %p96
        $region46: #{tpu_custom_call.1} parent=39 // pred_check_branch
          %334 = sbr.rel (%p332) target = $region48
        $region47: #{tpu_custom_call.1} parent=39 // pred_region
          %336 = dma.done %s328, 512
        $region48: #{tpu_custom_call.1} parent=39 // pred_fallthru
          _
        %s337 = sand.u32 %s26, 1
        %s338 = scalar_lea.sflag [#allocation10], %s337
        %s339 = sand.u32 %s111, 1
        %s340 = smul.addr %s339, 32
        %s341 = scalar_lea.vmem [#allocation11], %s340
        // Predicated region
        $region49: #{tpu_custom_call.1} parent=39 // pred_check
          %p342 = pneg %p124
        $region50: #{tpu_custom_call.1} parent=39 // pred_check_branch
          %344 = sbr.rel (%p342) target = $region52
        $region51: #{tpu_custom_call.1} parent=39 // pred_region
          %346 = dma.done %s338, 512
        $region52: #{tpu_custom_call.1} parent=39 // pred_fallthru
          _
        // Predicated region
        $region53: #{tpu_custom_call.1} parent=39 // pred_check
          %p347 = pneg %p145
        $region54: #{tpu_custom_call.1} parent=39 // pred_check_branch
          %349 = sbr.rel (%p347) target = $region56
        $region55: #{tpu_custom_call.1} parent=39 // pred_region
          %351 = dma.done [#allocation13], 512
        $region56: #{tpu_custom_call.1} parent=39 // pred_fallthru
          _
        // Predicated region
        $region57: #{tpu_custom_call.1} parent=39 // pred_check
          %p352 = pneg %p166
        $region58: #{tpu_custom_call.1} parent=39 // pred_check_branch
          %354 = sbr.rel (%p352) target = $region60
        $region59: #{tpu_custom_call.1} parent=39 // pred_region
          %356 = dma.done [#allocation13], 512
        $region60: #{tpu_custom_call.1} parent=39 // pred_fallthru
          _
        %s357 = sand.u32 %s55, 1
        %s358 = scalar_lea.sflag [#allocation7], %s357
        %s359 = sand.u32 %s55, 1
        %s360 = smul.addr %s359, 32
        %s361 = scalar_lea.vmem [#allocation6], %s360
        %p362 = pneg %p68
        %p363 = pneg %p65
        %s364 = sand.u32 %s26, 1
        %s365 = scalar_lea.sflag [#allocation10], %s364
        %s366 = sand.u32 %s83, 1
        %s367 = smul.addr %s366, 32
        %s368 = scalar_lea.vmem [#allocation9], %s367
        %p369 = pneg %p96
        %p370 = pneg %p93
        %s371 = sand.u32 %s26, 1
        %s372 = scalar_lea.sflag [#allocation10], %s371
        %s373 = sand.u32 %s111, 1
        %s374 = smul.addr %s373, 32
        %s375 = scalar_lea.vmem [#allocation11], %s374
        %p376 = pneg %p124
        %p377 = pneg %p121
        %p378 = pneg %p145
        %p379 = pneg %p142
        %p380 = pneg %p166
        %p381 = pneg %p163
        %p382 = pneg %p194
        %p383 = pneg %p191
        %s384 = sand.u32 %s181, 1
        %s385 = scalar_lea.sflag [#allocation8], %s384
        %s386 = sand.u32 %s181, 1
        %s387 = smul.addr %s386, 32
        %s388 = scalar_lea.vmem [#allocation15], %s387
        %p389 = scmp.eq.s32.totalorder %s33, 0
        // Predicated region
        $region61: #{tpu_custom_call.1} parent=39 // pred_check
          %p390 = pneg %p389
        $region62: #{tpu_custom_call.1} parent=39 // pred_check_branch
          %392 = sbr.rel (%p390) target = $region64
        $region63: #{tpu_custom_call.1} parent=39 // pred_region
          %v393 = vld [vmem:[#allocation12] sm:$0xff]
          %v394 = vld [vmem:[#allocation12 + $0x8] sm:$0xff]
          %v395 = vld [vmem:[#allocation12 + $0x10] sm:$0xff]
          %v396 = vld [vmem:[#allocation12 + $0x18] sm:$0xff]
          %v397 = vld [vmem:[%s321] sm:$0xff]
          %v398 = vld [vmem:[%s321 + $0x8] sm:$0xff]
          %v399 = vld [vmem:[%s321 + $0x10] sm:$0xff]
          %v400 = vld [vmem:[%s321 + $0x18] sm:$0xff]
          %vm401 = vcmask 261120
          %v403 = vsel %vm401, %v393, 0
          %v406 = vsel %vm401, %v394, 0
          %v409 = vsel %vm401, %v395, 0
          %v412 = vsel %vm401, %v396, 0
          %414 = vmatpush.msra.mxu0 0.0
          %415 = vmatpush.msra.mxu0 0.0
          %416 = vmatpush.msra.mxu0 0.0
          %417 = vmatpush.msra.mxu0 0.0
          %418 = vmatpush.msra.mxu0 0.0
          %419 = vmatpush.msra.mxu0 0.0
          %420 = vmatpush.msra.mxu0 0.0
          %421 = vmatpush.msra.mxu0 0.0
          %422 = vmatpush.msra.mxu0 0.0
          %423 = vmatpush.msra.mxu0 0.0
          %424 = vmatpush.msra.mxu0 0.0
          %425 = vmatpush.msra.mxu0 0.0
          %426 = vmatpush.msra.mxu0 %v400
          %427 = vmatpush.msra.mxu0 %v399
          %428 = vmatpush.msra.mxu0 %v398
          %429 = vmatpush.msra.mxu0 %v397
          %430 = vmatmul.f32.gmra.mxu0 %v403
          %v431 = vpop.f32.mrf.mxu0
          %v432 = vadd.f32 0.0, %v431
          %433 = vmatmul.f32.gmra.mxu0 %v406
          %v434 = vpop.f32.mrf.mxu0
          %v435 = vadd.f32 0.0, %v434
          %436 = vmatmul.f32.gmra.mxu0 %v409
          %v437 = vpop.f32.mrf.mxu0
          %v438 = vadd.f32 0.0, %v437
          %439 = vmatmul.f32.gmra.mxu0 %v412
          %v440 = vpop.f32.mrf.mxu0
          %v441 = vadd.f32 0.0, %v440
          %442 = vdwg.mxu0
          %vm443 = vcmask 523264
          %444 = vst.msk [vmem:[#allocation2] sm:$0xff] %vm443, %v432
          %445 = vst.msk [vmem:[#allocation2 + $0x8] sm:$0xff] %vm443, %v435
          %446 = vst.msk [vmem:[#allocation2 + $0x10] sm:$0xff] %vm443, %v438
          %447 = vst.msk [vmem:[#allocation2 + $0x18] sm:$0xff] %vm443, %v441
          %vm448 = vcmask 516096
          %449 = vst.msk [vmem:[#allocation3] sm:$0x1] %vm448, -inf
          %450 = vst.msk [vmem:[#allocation4] sm:$0x1] %vm448, 0.0
          %451 = vst.msk [vmem:[#allocation5] sm:$0xff] %vm443, 0.0
          %452 = vst.msk [vmem:[#allocation5 + $0x8] sm:$0xff] %vm443, 0.0
          %453 = vst.msk [vmem:[#allocation5 + $0x10] sm:$0xff] %vm443, 0.0
          %454 = vst.msk [vmem:[#allocation5 + $0x18] sm:$0xff] %vm443, 0.0
        $region64: #{tpu_custom_call.1} parent=39 // pred_fallthru
          _
        %v455 = vld [vmem:[%s331] sm:$0xff]
        %v456 = vld [vmem:[%s331 + $0x8] sm:$0xff]
        %v457 = vld [vmem:[%s331 + $0x10] sm:$0xff]
        %v458 = vld [vmem:[%s331 + $0x18] sm:$0xff]
        %v459 = vld [vmem:[#allocation2] sm:$0xff]
        %v460 = vld [vmem:[#allocation2 + $0x8] sm:$0xff]
        %v461 = vld [vmem:[#allocation2 + $0x10] sm:$0xff]
        %v462 = vld [vmem:[#allocation2 + $0x18] sm:$0xff]
        %463 = vxpose.xlu0.b32.start [1/16] %v455, 128
        %464 = vxpose.xlu0.b32.cont [2/16] %v456, 128
        %465 = vxpose.xlu0.b32.cont [3/16] %v457, 128
        %466 = vxpose.xlu0.b32.cont [4/16] %v458, 128
        %467 = vxpose.xlu0.b32.cont [5/16] 0.0, 128
        %468 = vxpose.xlu0.b32.cont [6/16] 0.0, 128
        %469 = vxpose.xlu0.b32.cont [7/16] 0.0, 128
        %470 = vxpose.xlu0.b32.cont [8/16] 0.0, 128
        %471 = vxpose.xlu0.b32.cont [9/16] 0.0, 128
        %472 = vxpose.xlu0.b32.cont [10/16] 0.0, 128
        %473 = vxpose.xlu0.b32.cont [11/16] 0.0, 128
        %474 = vxpose.xlu0.b32.cont [12/16] 0.0, 128
        %475 = vxpose.xlu0.b32.cont [13/16] 0.0, 128
        %476 = vxpose.xlu0.b32.cont [14/16] 0.0, 128
        %477 = vxpose.xlu0.b32.cont [15/16] 0.0, 128
        %478 = vxpose.xlu0.b32.end [16/16] 0.0, 128
        %v479 = vpop.trf.xlu0
        %v480 = vpop.trf.xlu0
        %v481 = vpop.trf.xlu0
        %v482 = vpop.trf.xlu0
        %v483 = vpop.trf.xlu0
        %v484 = vpop.trf.xlu0
        %v485 = vpop.trf.xlu0
        %v486 = vpop.trf.xlu0
        %v487 = vpop.trf.xlu0
        %v488 = vpop.trf.xlu0
        %v489 = vpop.trf.xlu0
        %v490 = vpop.trf.xlu0
        %v491 = vpop.trf.xlu0
        %v492 = vpop.trf.xlu0
        %v493 = vpop.trf.xlu0
        %v494 = vpop.trf.xlu0
        %vm495 = vcmask 261120
        %v497 = vsel %vm495, %v479, 0
        %v500 = vsel %vm495, %v480, 0
        %v503 = vsel %vm495, %v481, 0
        %v506 = vsel %vm495, %v482, 0
        %v509 = vsel %vm495, %v483, 0
        %v512 = vsel %vm495, %v484, 0
        %v515 = vsel %vm495, %v485, 0
        %v518 = vsel %vm495, %v486, 0
        %520 = vmatpush.msra.mxu0 0.0
        %521 = vmatpush.msra.mxu0 0.0
        %522 = vmatpush.msra.mxu0 0.0
        %523 = vmatpush.msra.mxu0 0.0
        %524 = vmatpush.msra.mxu0 0.0
        %525 = vmatpush.msra.mxu0 0.0
        %526 = vmatpush.msra.mxu0 0.0
        %527 = vmatpush.msra.mxu0 0.0
        %528 = vmatpush.msra.mxu0 0.0
        %529 = vmatpush.msra.mxu0 0.0
        %530 = vmatpush.msra.mxu0 0.0
        %531 = vmatpush.msra.mxu0 0.0
        %532 = vmatpush.msra.mxu0 %v462
        %533 = vmatpush.msra.mxu0 %v461
        %534 = vmatpush.msra.mxu0 %v460
        %535 = vmatpush.msra.mxu0 %v459
        %536 = vmatmul.f32.gmra.mxu0 %v497
        %v537 = vpop.f32.mrf.mxu0
        %v538 = vadd.f32 0.0, %v537
        %539 = vmatmul.f32.gmra.mxu0 %v500
        %v540 = vpop.f32.mrf.mxu0
        %v541 = vadd.f32 0.0, %v540
        %542 = vmatmul.f32.gmra.mxu0 %v503
        %v543 = vpop.f32.mrf.mxu0
        %v544 = vadd.f32 0.0, %v543
        %545 = vmatmul.f32.gmra.mxu0 %v506
        %v546 = vpop.f32.mrf.mxu0
        %v547 = vadd.f32 0.0, %v546
        %548 = vmatmul.f32.gmra.mxu0 %v509
        %v549 = vpop.f32.mrf.mxu0
        %v550 = vadd.f32 0.0, %v549
        %551 = vmatmul.f32.gmra.mxu0 %v512
        %v552 = vpop.f32.mrf.mxu0
        %v553 = vadd.f32 0.0, %v552
        %554 = vmatmul.f32.gmra.mxu0 %v515
        %v555 = vpop.f32.mrf.mxu0
        %v556 = vadd.f32 0.0, %v555
        %557 = vmatmul.f32.gmra.mxu0 %v518
        %v558 = vpop.f32.mrf.mxu0
        %v559 = vadd.f32 0.0, %v558
        %560 = vdwg.mxu0
        %v561 = vld [vmem:[#allocation14] sm:$0xff]
        %v562 = vld [vmem:[#allocation14 + $0x8] sm:$0xff]
        %v563 = vld [vmem:[#allocation14 + $0x10] sm:$0xff]
        %v564 = vld [vmem:[#allocation14 + $0x18] sm:$0xff]
        %v565 = vld [vmem:[%s341] sm:$0xff]
        %v566 = vld [vmem:[%s341 + $0x8] sm:$0xff]
        %v567 = vld [vmem:[%s341 + $0x10] sm:$0xff]
        %v568 = vld [vmem:[%s341 + $0x18] sm:$0xff]
        %v570 = vsel %vm495, %v561, 0
        %v573 = vsel %vm495, %v562, 0
        %v576 = vsel %vm495, %v563, 0
        %v579 = vsel %vm495, %v564, 0
        %581 = vmatpush.msra.mxu0 0.0
        %582 = vmatpush.msra.mxu0 0.0
        %583 = vmatpush.msra.mxu0 0.0
        %584 = vmatpush.msra.mxu0 0.0
        %585 = vmatpush.msra.mxu0 0.0
        %586 = vmatpush.msra.mxu0 0.0
        %587 = vmatpush.msra.mxu0 0.0
        %588 = vmatpush.msra.mxu0 0.0
        %589 = vmatpush.msra.mxu0 0.0
        %590 = vmatpush.msra.mxu0 0.0
        %591 = vmatpush.msra.mxu0 0.0
        %592 = vmatpush.msra.mxu0 0.0
        %593 = vmatpush.msra.mxu0 %v568
        %594 = vmatpush.msra.mxu0 %v567
        %595 = vmatpush.msra.mxu0 %v566
        %596 = vmatpush.msra.mxu0 %v565
        %597 = vmatmul.f32.gmra.mxu0 %v570
        %v598 = vpop.f32.mrf.mxu0
        %v599 = vadd.f32 0.0, %v598
        %600 = vmatmul.f32.gmra.mxu0 %v573
        %v601 = vpop.f32.mrf.mxu0
        %v602 = vadd.f32 0.0, %v601
        %603 = vmatmul.f32.gmra.mxu0 %v576
        %v604 = vpop.f32.mrf.mxu0
        %v605 = vadd.f32 0.0, %v604
        %606 = vmatmul.f32.gmra.mxu0 %v579
        %v607 = vpop.f32.mrf.mxu0
        %v608 = vadd.f32 0.0, %v607
        %609 = vdwg.mxu0
        %v610 = vld [vmem:[#allocation3] sm:$0x1]
        %vm611 = vcmask 523264
        %v612 = vsel %vm611, %v538, -inf
        %v613 = vsel %vm611, %v541, -inf
        %v614 = vsel %vm611, %v544, -inf
        %v615 = vsel %vm611, %v547, -inf
        %v616 = vsel %vm611, %v550, -inf
        %v617 = vmax.f32 %v612, %v616
        %v618 = vsel %vm611, %v553, -inf
        %v619 = vmax.f32 %v613, %v618
        %v620 = vsel %vm611, %v556, -inf
        %v621 = vmax.f32 %v614, %v620
        %v622 = vsel %vm611, %v559, -inf
        %v623 = vmax.f32 %v615, %v622
        %v624 = vmax.f32 %v617, %v619
        %v625 = vmax.f32 %v621, %v623
        %v626 = vmax.f32 %v624, %v625
        %v627 = vrot.slane %v626, 4
        %v628 = vmax.f32 %v626, %v627
        %v629 = vrot.slane %v628, 2
        %v630 = vmax.f32 %v628, %v629
        %v631 = vrot.slane %v630, 1
        %v632 = vmax.f32 %v630, %v631
        %v633 = vmax.f32 %v610, %v632
        %v634 = vsub.f32 %v610, %v633
        %v635 = vmul.f32 %v634, 1.442695
        %v636 = vpow.pop %v635
        %v638 = vperm.slane %v633, 0
        %v640 = vsub.f32 %v538, %v638
        %v641 = vsub.f32 %v541, %v638
        %v642 = vsub.f32 %v544, %v638
        %v643 = vsub.f32 %v547, %v638
        %v644 = vsub.f32 %v550, %v638
        %v645 = vsub.f32 %v553, %v638
        %v646 = vsub.f32 %v556, %v638
        %v647 = vsub.f32 %v559, %v638
        %v648 = vmul.f32 %v640, 1.442695
        %v649 = vpow.pop %v648
        %v650 = vmul.f32 %v641, 1.442695
        %v651 = vpow.pop %v650
        %v652 = vmul.f32 %v642, 1.442695
        %v653 = vpow.pop %v652
        %v654 = vmul.f32 %v643, 1.442695
        %v655 = vpow.pop %v654
        %v656 = vmul.f32 %v644, 1.442695
        %v657 = vpow.pop %v656
        %v658 = vmul.f32 %v645, 1.442695
        %v659 = vpow.pop %v658
        %v660 = vmul.f32 %v646, 1.442695
        %v661 = vpow.pop %v660
        %v662 = vmul.f32 %v647, 1.442695
        %v663 = vpow.pop %v662
        %v664 = vld [vmem:[#allocation4] sm:$0x1]
        %v665 = vmul.f32 %v636, %v664
        %v666 = vsel %vm611, %v649, 0.0
        %v667 = vsel %vm611, %v651, 0.0
        %v668 = vadd.f32 %v666, %v667
        %v669 = vsel %vm611, %v653, 0.0
        %v670 = vadd.f32 %v668, %v669
        %v671 = vsel %vm611, %v655, 0.0
        %v672 = vadd.f32 %v670, %v671
        %v673 = vsel %vm611, %v657, 0.0
        %v674 = vadd.f32 %v672, %v673
        %v675 = vsel %vm611, %v659, 0.0
        %v676 = vadd.f32 %v674, %v675
        %v677 = vsel %vm611, %v661, 0.0
        %v678 = vadd.f32 %v676, %v677
        %v679 = vsel %vm611, %v663, 0.0
        %v680 = vadd.f32 %v678, %v679
        %v681 = vrot.slane %v680, 4
        %v682 = vadd.f32 %v680, %v681
        %v683 = vrot.slane %v682, 2
        %v684 = vadd.f32 %v682, %v683
        %v685 = vrot.slane %v684, 1
        %v686 = vadd.f32 %v684, %v685
        %v687 = vadd.f32 %v665, %v686
        %vm688 = vcmask 516096
        %689 = vst.msk [vmem:[#allocation4] sm:$0x1] %vm688, %v687
        %v690 = vld [vmem:[#allocation5] sm:$0xff]
        %v691 = vld [vmem:[#allocation5 + $0x8] sm:$0xff]
        %v692 = vld [vmem:[#allocation5 + $0x10] sm:$0xff]
        %v693 = vld [vmem:[#allocation5 + $0x18] sm:$0xff]
        %v695 = vperm.slane %v636, 0
        %v697 = vmul.f32 %v695, %v690
        %v698 = vmul.f32 %v695, %v691
        %v699 = vmul.f32 %v695, %v692
        %v700 = vmul.f32 %v695, %v693
        %v702 = vsel %vm611, %v599, 0
        %v705 = vsel %vm611, %v602, 0
        %v708 = vsel %vm611, %v605, 0
        %v711 = vsel %vm611, %v608, 0
        %713 = vmatpush.msra.mxu0 0.0
        %714 = vmatpush.msra.mxu0 0.0
        %715 = vmatpush.msra.mxu0 0.0
        %716 = vmatpush.msra.mxu0 0.0
        %717 = vmatpush.msra.mxu0 0.0
        %718 = vmatpush.msra.mxu0 0.0
        %719 = vmatpush.msra.mxu0 0.0
        %720 = vmatpush.msra.mxu0 0.0
        %721 = vmatpush.msra.mxu0 %v663
        %722 = vmatpush.msra.mxu0 %v661
        %723 = vmatpush.msra.mxu0 %v659
        %724 = vmatpush.msra.mxu0 %v657
        %725 = vmatpush.msra.mxu0 %v655
        %726 = vmatpush.msra.mxu0 %v653
        %727 = vmatpush.msra.mxu0 %v651
        %728 = vmatpush.msra.mxu0 %v649
        %729 = vmatmul.f32.gmra.mxu0 %v702
        %v730 = vpop.f32.mrf.mxu0
        %v731 = vadd.f32 0.0, %v730
        %732 = vmatmul.f32.gmra.mxu0 %v705
        %v733 = vpop.f32.mrf.mxu0
        %v734 = vadd.f32 0.0, %v733
        %735 = vmatmul.f32.gmra.mxu0 %v708
        %v736 = vpop.f32.mrf.mxu0
        %v737 = vadd.f32 0.0, %v736
        %738 = vmatmul.f32.gmra.mxu0 %v711
        %v739 = vpop.f32.mrf.mxu0
        %v740 = vadd.f32 0.0, %v739
        %741 = vdwg.mxu0
        %v742 = vadd.f32 %v697, %v731
        %v743 = vadd.f32 %v698, %v734
        %v744 = vadd.f32 %v699, %v737
        %v745 = vadd.f32 %v700, %v740
        %746 = vst.msk [vmem:[#allocation5] sm:$0xff] %vm611, %v742
        %747 = vst.msk [vmem:[#allocation5 + $0x8] sm:$0xff] %vm611, %v743
        %748 = vst.msk [vmem:[#allocation5 + $0x10] sm:$0xff] %vm611, %v744
        %749 = vst.msk [vmem:[#allocation5 + $0x18] sm:$0xff] %vm611, %v745
        %750 = vst.msk [vmem:[#allocation3] sm:$0x1] %vm688, %v633
        // Predicated region
        $region65: #{tpu_custom_call.1} parent=39 // pred_check
          %p751 = pneg %p389
        $region66: #{tpu_custom_call.1} parent=39 // pred_check_branch
          %753 = sbr.rel (%p751) target = $region68
        $region67: #{tpu_custom_call.1} parent=39 // pred_region
          %v754 = vld [vmem:[#allocation4] sm:$0x1]
          %v755 = vrcp.pop %v754
          %v756 = vmul.f32 %v754, %v755
          %v757 = vsub.f32 2.0, %v756
          %v758 = vmul.f32 %v755, %v757
          %v759 = vld [vmem:[#allocation5] sm:$0xff]
          %v760 = vld [vmem:[#allocation5 + $0x8] sm:$0xff]
          %v761 = vld [vmem:[#allocation5 + $0x10] sm:$0xff]
          %v762 = vld [vmem:[#allocation5 + $0x18] sm:$0xff]
          %v764 = vperm.slane %v758, 0
          %v766 = vmul.f32 %v759, %v764
          %v767 = vmul.f32 %v760, %v764
          %v768 = vmul.f32 %v761, %v764
          %v769 = vmul.f32 %v762, %v764
          %770 = vst.msk [vmem:[%s388] sm:$0xff] %vm611, %v766
          %771 = vst.msk [vmem:[%s388 + $0x8] sm:$0xff] %vm611, %v767
          %772 = vst.msk [vmem:[%s388 + $0x10] sm:$0xff] %vm611, %v768
          %773 = vst.msk [vmem:[%s388 + $0x18] sm:$0xff] %vm611, %v769
        $region68: #{tpu_custom_call.1} parent=39 // pred_fallthru
          _
        %s774 = sand.u32 %s181, 1
        %s775 = scalar_lea.sflag [#allocation8], %s774
        %s776 = sand.u32 %s181, 1
        %s777 = smul.addr %s776, 32
        %s778 = scalar_lea.vmem [#allocation15], %s777
        // Predicated region
        $region69: #{tpu_custom_call.1} parent=39 // pred_check
          %p779 = pneg %p191
        $region70: #{tpu_custom_call.1} parent=39 // pred_check_branch
          %781 = sbr.rel (%p779) target = $region72
        $region71: #{tpu_custom_call.1} parent=39 // pred_region
          %783 = vsyncadd %s775, 0
          %s784 = smul.addr %s31, 4
          %s785 = sadd.s32 %s32, %s784
          %s786 = smul.addr %s785, 8
          %s787 = scalar_lea.hbm %s5, %s786
          %s788 = sshll.u32 %s778, 4
          %s789 = int_to_ptr.vmem [resolvable:$true] %s788
          %s790 = sshll.u32 %s787, 4
          %s791 = int_to_ptr.hbm [resolvable:$true] %s790
          %796 = dma.vmem_to_hbm [thread:$0]  %s789, 512, %s791, %s775, 128, 128, 8
        $region72: #{tpu_custom_call.1} parent=39 // pred_fallthru
          _
      $region40: #{tpu_custom_call.1} parent=5 // pred_fallthru
        _
      %p797 = scmp.le.s32.totalorder 2, %s21
      // Predicated region
      $region73: #{tpu_custom_call.1} parent=5 // pred_check
        %p798 = pneg %p797
      $region74: #{tpu_custom_call.1} parent=5 // pred_check_branch
        %800 = sbr.rel (%p798) target = $region76
      $region75: #{tpu_custom_call.1} parent=5 // pred_region
        %s801 = ssub.s32 %s21, 2
        // Predicated region
        $region77: #{tpu_custom_call.1} parent=75 // pred_check
          %p802 = pneg %p197
        $region78: #{tpu_custom_call.1} parent=75 // pred_check_branch
          %804 = sbr.rel (%p802) target = $region80
        $region79: #{tpu_custom_call.1} parent=75 // pred_region
          %s805 = sand.u32 %s182, 1
          %s806 = scalar_lea.sflag [#allocation8], %s805
          %s807 = sand.u32 %s182, 1
          %s808 = smul.addr %s807, 32
          %s809 = scalar_lea.vmem [#allocation15], %s808
          %811 = dma.done %s806, 512
        $region80: #{tpu_custom_call.1} parent=75 // pred_fallthru
          _
      $region76: #{tpu_custom_call.1} parent=5 // pred_fallthru
        _
    $region6: #{tpu_custom_call.1} parent=1 // loop_footer
      %s25 = sadd.s32 1, %s21
    $region7: #{tpu_custom_call.1} parent=1 // loop_footer_branch
      %20 = sbr.rel target = $region3
    $region8: #{tpu_custom_call.1} parent=1 // loop_exit
      _
    %812 = vsyncpa [#allocation7], 1
    %s813 = scalar_lea.sflag [#allocation7], 1
    %814 = vsyncpa %s813, 1
    %815 = vsyncpa [#allocation10], 1
    %s816 = scalar_lea.sflag [#allocation10], 1
    %817 = vsyncpa %s816, 1
    %818 = vsyncpa [#allocation13], 1
    %819 = vsyncpa [#allocation8], 1
    %s820 = scalar_lea.sflag [#allocation8], 1
    %821 = vsyncpa %s820, 1

</llo_original>
